<compile_context>
chip_gen: v7x
topology: tpu7x:2x2x1
jax: 0.10.0
libtpu: 0.0.40
codegen_flags: <defaults>
</compile_context>

<pallas_src>
import jax
import jax.numpy as jnp
import numpy as np
from jax.experimental import pallas as pl
from jax.experimental.pallas import tpu as pltpu

_LANES = 128  # packed result-slab width: one full vreg lane group


def _reorder_gates(w, hc):
    """Reorder gate columns (i, f, g, o) -> (i, f, o, g) along the last axis."""
    return jnp.concatenate(
        [w[..., :2 * hc], w[..., 3 * hc:4 * hc], w[..., 2 * hc:3 * hc]],
        axis=-1)


def _skip_lstm_block_kernel(gx_ref, skip_ref, whh_ref, wlin_ref, blin_ref,
                            s0_ref, out_ref, state):
    """TT SkipLSTM cell steps per grid iteration; recurrent state in VMEM.

    Packed slab layout (lanes), shared by the state scratch, s0 and the output:
      [0 : HC)        h          (new_h on output)
      [HC : 2*HC)     c          (new_c on output)
      2*HC + 0        binarized_u (output only, zero as state input)
      2*HC + 1        u          (new_u on output)
      2*HC + 2        delta_u    (delta_u out on output)
      2*HC + 3        n_skips_after (output only, zero as state input)
      rest            zero padding up to 128 lanes
    """
    hc = whh_ref.shape[0]
    tt_steps = gx_ref.shape[0]
    bsz = gx_ref.shape[1]
    p = out_ref.shape[-1]
    pad_w = p - 2 * hc - 4

    @pl.when(pl.program_id(0) == 0)
    def _():
        state[...] = s0_ref[...]

    st = state[...]                      # (B, 128) packed carried state
    h0 = st[:, 0:hc]
    c0 = st[:, hc:2 * hc]
    u0 = st[:, 2 * hc + 1:2 * hc + 2]
    du0 = st[:, 2 * hc + 2:2 * hc + 3]

    # Parameters: loaded once per grid block (constant index_map -> resident).
    whh = whh_ref[...]                   # (HC, 4*HC), gate order (i, f, o, g)
    wlin = wlin_ref[...]                 # (1, HC)
    blin = blin_ref[...]                 # (1, 1)

    def step(tt, carry):
        h, c, u, du_in = carry
        gx = gx_ref[tt]                  # (B, 4*HC)  precomputed x @ w_ih + b
        skip = skip_ref[tt]              # (B, 1)     1.0 where sample skips

        # STE binarizer (torch.round == round-half-to-even == jnp.round)
        bin_u = jnp.round(u)

        # ------------- non-skip branch: LSTM cell (recurrent matmul only) ---
        gates = gx + jnp.dot(h, whh, preferred_element_type=jnp.float32)
        sig = jax.nn.sigmoid(gates[:, 0:3 * hc])      # i, f, o contiguous
        g_g = jnp.tanh(gates[:, 3 * hc:4 * hc])       # g gate only
        i_g = sig[:, 0:hc]
        f_g = sig[:, hc:2 * hc]
        o_g = sig[:, 2 * hc:3 * hc]

        c_cell = f_g * c + i_g * g_g
        h_cell = o_g * jnp.tanh(c_cell)

        h_n = h_cell * bin_u
        c_n = c_cell * bin_u
        # (HC -> 1) linear head on the VPU + cross-lane reduce (no N=1 matmul)
        du_n = jax.nn.sigmoid(
            jnp.sum(c_n * wlin, axis=-1, keepdims=True) + blin)
        u_n = du_n * bin_u

        # ------------- skip branch: pure element-wise update ----------------
        omb = 1.0 - bin_u
        h_s = h * omb
        c_s = c * omb
        u_s = jnp.clip(u + du_in, 0.0, 1.0) * omb

        # ------------- merge (equivalent to the cat/index shuffle) ----------
        is_skip = skip > 0.5
        new_h = jnp.where(is_skip, h_s, h_n)
        new_c = jnp.where(is_skip, c_s, c_n)
        new_u = jnp.where(is_skip, u_s, u_n)
        du_out = jnp.where(is_skip, du_in, du_n)
        # inf when new_u == 0 — intentionally identical to the PyTorch module.
        nskips = jnp.ceil(0.5 / new_u) - 1.0

        # ------------- assemble full 128-lane slab; ONE full-width store ----
        slab = jnp.concatenate(
            [new_h, new_c, bin_u, new_u, du_out, nskips,
             jnp.zeros((bsz, pad_w), jnp.float32)], axis=-1)
        out_ref[tt] = slab
        return (new_h, new_c, new_u, du_out)

    h, c, u, du = jax.lax.fori_loop(0, tt_steps, step, (h0, c0, u0, du0),
                                    unroll=True)

    # Carried state written back once per TT-step block, full-width.
    zcol = jnp.zeros((bsz, 1), jnp.float32)
    state[...] = jnp.concatenate(
        [h, c, zcol, u, du, zcol, jnp.zeros((bsz, pad_w), jnp.float32)],
        axis=-1)


def skip_lstm_sequence(x_seq, skip_seq, u0, h0, c0, delta_u0,
                       w_ih, w_hh, b_ih, b_hh, w_lin, b_lin, *, tt=8):
    """Runs T SkipLSTM cell steps; TT steps per grid iteration inside one
    pallas_call.  (u, h, c, delta_u) are carried step-to-step in VMEM;
    `skip_seq` gives the per-step / per-sample skip decision — equivalent to
    calling the PyTorch cell T times, feeding each step's outputs back in.

    Returns per-step (binarized_u, new_u, new_h, new_c, delta_u,
    n_skips_after), each with a leading time axis.
    """
    f32 = jnp.float32
    T, B, IC = x_seq.shape
    HC = h0.shape[-1]
    P = _LANES
    assert 2 * HC + 4 <= P, "packed-slab layout assumes 2*HC + 4 <= 128"
    # NOTE: B should be a multiple of 8 (f32 sublanes) for best layout; the
    # kernel is still correct otherwise.

    # Reordered gate parameters (i, f, g, o) -> (i, f, o, g).
    w_ih_r = _reorder_gates(jnp.asarray(w_ih, f32), HC)            # (IC, 4*HC)
    w_hh_r = _reorder_gates(jnp.asarray(w_hh, f32), HC)            # (HC, 4*HC)
    b_gates = _reorder_gates(
        (jnp.asarray(b_ih, f32).reshape(-1)
         + jnp.asarray(b_hh, f32).reshape(-1)).reshape(1, 4 * HC), HC)
    w_lin_row = jnp.asarray(w_lin, f32).reshape(1, HC)
    b_lin_s = jnp.asarray(b_lin, f32).reshape(1, 1)

    # Hoisted input projection: one (T*B, IC) @ (IC, 4*HC) matmul in XLA,
    # streamed into the recurrence as lane-dense (TT, B, 4*HC) blocks.
    gates_x = jnp.einsum('tbi,ij->tbj', x_seq.astype(f32), w_ih_r) + b_gates
    skip_f = skip_seq.astype(f32).reshape(T, B, 1)

    # Pad the time axis to a multiple of TT (padded steps are discarded).
    TT = int(tt)
    Tp = ((T + TT - 1) // TT) * TT
    if Tp != T:
        gates_x = jnp.concatenate(
            [gates_x, jnp.zeros((Tp - T, B, 4 * HC), f32)], axis=0)
        skip_f = jnp.concatenate(
            [skip_f, jnp.zeros((Tp - T, B, 1), f32)], axis=0)

    # Packed initial-state slab (same lane layout as the kernel output).
    zcol = jnp.zeros((B, 1), f32)
    state0 = jnp.concatenate(
        [h0.astype(f32), c0.astype(f32), zcol, u0.astype(f32),
         delta_u0.astype(f32), zcol, jnp.zeros((B, P - 2 * HC - 4), f32)],
        axis=-1)

    out = pl.pallas_call(
        _skip_lstm_block_kernel,
        out_shape=jax.ShapeDtypeStruct((Tp, B, P), f32),
        grid_spec=pltpu.PrefetchScalarGridSpec(
            num_scalar_prefetch=0,
            grid=(Tp // TT,),
            in_specs=[
                # per-block precomputed input gates (lane-dense 4*HC)
                pl.BlockSpec((TT, B, 4 * HC), lambda t: (t, 0, 0)),
                # per-block skip flags (tiny stream)
                pl.BlockSpec((TT, B, 1), lambda t: (t, 0, 0)),
                # parameters: constant block index -> DMA'd to VMEM once
                pl.BlockSpec((HC, 4 * HC), lambda t: (0, 0)),
                pl.BlockSpec((1, HC), lambda t: (0, 0)),
                pl.BlockSpec((1, 1), lambda t: (0, 0)),
                # packed initial state (read only at grid step 0)
                pl.BlockSpec((B, P), lambda t: (0, 0)),
            ],
            out_specs=pl.BlockSpec((TT, B, P), lambda t: (t, 0, 0)),
            scratch_shapes=[pltpu.VMEM((B, P), f32)],
        ),
        compiler_params=pltpu.CompilerParams(
            # Time is a true recurrence -> "arbitrary".
            dimension_semantics=("arbitrary",)),
    )(gates_x, skip_f, w_hh_r, w_lin_row, b_lin_s, state0)

    out = out[:T]
    # Unpack the lane-dense slab in plain JAX (cheap slices).
    binarized_u = out[:, :, 2 * HC + 0:2 * HC + 1]
    new_u = out[:, :, 2 * HC + 1:2 * HC + 2]
    new_h = out[:, :, 0:HC]
    new_c = out[:, :, HC:2 * HC]
    delta_u = out[:, :, 2 * HC + 2:2 * HC + 3]
    n_skips_after = out[:, :, 2 * HC + 3:2 * HC + 4]
    return binarized_u, new_u, new_h, new_c, delta_u, n_skips_after


def skip_lstm_cell(x, u, h, c, skip_mask, delta_u,
                   w_ih, w_hh, b_ih, b_hh, w_lin, b_lin):
    """Single SkipLSTMCell step (mirrors the PyTorch module's forward)."""
    outs = skip_lstm_sequence(x[None], skip_mask[None], u, h, c, delta_u,
                              w_ih, w_hh, b_ih, b_hh, w_lin, b_lin, tt=1)
    return tuple(o[0] for o in outs)


# ---------------------------- pure-JAX reference ----------------------------
def _reference_step(x, skip, u, h, c, du_in,
                    w_ih, w_hh, b_ih, b_hh, w_lin, b_lin):
    hc = h.shape[-1]
    bin_u = jnp.round(u)
    gates = x @ w_ih + h @ w_hh + b_ih + b_hh          # (i, f, g, o) order
    i_g = jax.nn.sigmoid(gates[:, 0 * hc:1 * hc])
    f_g = jax.nn.sigmoid(gates[:, 1 * hc:2 * hc])
    g_g = jnp.tanh(gates[:, 2 * hc:3 * hc])
    o_g = jax.nn.sigmoid(gates[:, 3 * hc:4 * hc])
    c_cell = f_g * c + i_g * g_g
    h_cell = o_g * jnp.tanh(c_cell)
    h_n = h_cell * bin_u
    c_n = c_cell * bin_u
    du_n = jax.nn.sigmoid(c_n @ w_lin + b_lin)
    u_n = du_n * bin_u
    omb = 1.0 - bin_u
    h_s, c_s = h * omb, c * omb
    u_s = jnp.clip(u + du_in, 0.0, 1.0) * omb
    is_skip = skip > 0.5
    new_h = jnp.where(is_skip, h_s, h_n)
    new_c = jnp.where(is_skip, c_s, c_n)
    new_u = jnp.where(is_skip, u_s, u_n)
    du_out = jnp.where(is_skip, du_in, du_n)
    nskips = jnp.ceil(0.5 / new_u) - 1.0
    return bin_u, new_u, new_h, new_c, du_out, nskips


def _reference_sequence(x_seq, skip_seq, u0, h0, c0, du0,
                        w_ih, w_hh, b_ih, b_hh, w_lin, b_lin):
    u, h, c, du = u0, h0, c0, du0
    outs = []
    for t in range(x_seq.shape[0]):
        step = _reference_step(x_seq[t], skip_seq[t], u, h, c, du,
                               w_ih, w_hh, b_ih, b_hh, w_lin, b_lin)
        outs.append(step)
        _, u, h, c, du, _ = step
    return tuple(jnp.stack(vals) for vals in zip(*outs))


if __name__ == "__main__":
    B, IC, HC, T = 8, 32, 32, 12
    key = jax.random.PRNGKey(0)
    ks = jax.random.split(key, 11)

    # deterministic synthetic parameters (nn.LSTMCell / nn.Linear style init)
    kb = 1.0 / np.sqrt(HC)
    w_ih = jax.random.uniform(ks[0], (IC, 4 * HC), jnp.float32, -kb, kb)
    w_hh = jax.random.uniform(ks[1], (HC, 4 * HC), jnp.float32, -kb, kb)
    b_ih = jax.random.uniform(ks[2], (1, 4 * HC), jnp.float32, -kb, kb)
    b_hh = jax.random.uniform(ks[3], (1, 4 * HC), jnp.float32, -kb, kb)
    w_lin = jax.random.normal(ks[4], (HC, 1), jnp.float32) * np.sqrt(2.0 / (HC + 1))
    b_lin = jnp.ones((1, 1), jnp.float32)   # linear bias filled with 1

    # sequence inputs + initial recurrent state
    x_seq = jax.random.normal(ks[5], (T, B, IC), jnp.float32)
    skip_seq = (jax.random.uniform(ks[6], (T, B, 1)) < 0.5).astype(jnp.float32)
    u0 = jax.random.uniform(ks[7], (B, 1), jnp.float32)
    h0 = jax.random.normal(ks[8], (B, HC), jnp.float32)
    c0 = jax.random.normal(ks[9], (B, HC), jnp.float32)
    delta_u0 = jax.random.uniform(ks[10], (B, 1), jnp.float32)

    # single cell step (module-equivalent interface, T = 1)
    cell_out = skip_lstm_cell(x_seq[0], u0, h0, c0, skip_seq[0], delta_u0,
                              w_ih, w_hh, b_ih, b_hh, w_lin, b_lin)
    cell_out = jax.block_until_ready(cell_out)

    # full sequence: T=12 with TT=8 steps per grid iteration (exercises both
    # the cross-block state carry and the time padding path)
    seq_out = skip_lstm_sequence(x_seq, skip_seq, u0, h0, c0, delta_u0,
                                 w_ih, w_hh, b_ih, b_hh, w_lin, b_lin, tt=8)
    seq_out = jax.block_until_ready(seq_out)

    # check against the pure-JAX (f32, module-faithful) reference
    ref_out = jax.block_until_ready(_reference_sequence(
        x_seq, skip_seq, u0, h0, c0, delta_u0,
        w_ih, w_hh, b_ih, b_hh, w_lin, b_lin))

    names = ("binarized_u", "new_u", "new_h", "new_c", "delta_u")
    for name, got, want in zip(names, cell_out[:5], [r[0] for r in ref_out[:5]]):
        np.testing.assert_allclose(np.asarray(got), np.asarray(want),
                                   rtol=1e-3, atol=1e-3, err_msg="step " + name)
    for name, got, want in zip(names, seq_out[:5], ref_out[:5]):
        np.testing.assert_allclose(np.asarray(got), np.asarray(want),
                                   rtol=1e-3, atol=1e-3, err_msg="seq " + name)
    # n_skips_after: ceil() is boundary-sensitive to tiny numeric differences
    # (and may legitimately be inf, as in torch), so only shapes are checked.
    assert cell_out[5].shape == (B, 1)
    assert seq_out[5].shape == (T, B, 1)

    print("KERNEL_OK")
</pallas_src>

<mosaic_0001>
module attributes {stable_mosaic.version = 11 : i64} {
  func.func @_skip_lstm_block_kernel(%arg0: i32, %arg1: memref<1x8x128xf32, #tpu.memory_space<vmem>>, %arg2: memref<1x8x1xf32, #tpu.memory_space<vmem>>, %arg3: memref<32x128xf32, #tpu.memory_space<vmem>>, %arg4: memref<1x32xf32, #tpu.memory_space<vmem>>, %arg5: memref<1x1xf32, #tpu.memory_space<vmem>>, %arg6: memref<8x128xf32, #tpu.memory_space<vmem>>, %arg7: memref<1x8x128xf32, #tpu.memory_space<vmem>>, %arg8: memref<8x128xf32, #tpu.memory_space<vmem>>) attributes {dimension_semantics = [#tpu.dimension_semantics<arbitrary>], iteration_bounds = array<i64: 1>, scalar_prefetch = 0 : i64, scratch_operands = 1 : i64, tpu.core_type = #tpu.core_type<tc>, window_params = [{transform_indices = @transform_0, window_bounds = array<i64: 1, 8, 128>}, {transform_indices = @transform_1, window_bounds = array<i64: 1, 8, 1>}, {pipeline_mode = #tpu.pipeline_mode<synchronous>, transform_indices = @transform_2, window_bounds = array<i64: 32, 128>}, {pipeline_mode = #tpu.pipeline_mode<synchronous>, transform_indices = @transform_3, window_bounds = array<i64: 1, 32>}, {pipeline_mode = #tpu.pipeline_mode<synchronous>, transform_indices = @transform_4, window_bounds = array<i64: 1, 1>}, {pipeline_mode = #tpu.pipeline_mode<synchronous>, transform_indices = @transform_5, window_bounds = array<i64: 8, 128>}, {transform_indices = @transform_6, window_bounds = array<i64: 1, 8, 128>}]} {
    %c0_i32 = arith.constant 0 : i32
    %0 = arith.cmpi eq, %arg0, %c0_i32 : i32
    %1 = arith.extui %0 : i1 to i32
    %c0_i32_0 = arith.constant 0 : i32
    %2 = arith.cmpi ne, %1, %c0_i32_0 : i32
    scf.if %2 {
      %c0_29 = arith.constant 0 : index
      %c0_30 = arith.constant 0 : index
      %89 = vector.load %arg6[%c0_29, %c0_30] : memref<8x128xf32, #tpu.memory_space<vmem>>, vector<8x128xf32>
      %c0_31 = arith.constant 0 : index
      %c0_32 = arith.constant 0 : index
      %90 = vector.load %arg8[%c0_31, %c0_32] : memref<8x128xf32, #tpu.memory_space<vmem>>, vector<8x128xf32>
      tpu.vector_store %arg8[%c0_31, %c0_32], %89 {strides = array<i32>} : memref<8x128xf32, #tpu.memory_space<vmem>>, vector<8x128xf32>,
    } else {
    }
    %c0 = arith.constant 0 : index
    %c0_1 = arith.constant 0 : index
    %3 = vector.load %arg8[%c0, %c0_1] : memref<8x128xf32, #tpu.memory_space<vmem>>, vector<8x128xf32>
    %4 = vector.extract_strided_slice %3 {offsets = [0, 0], sizes = [8, 32], strides = [1, 1]} : vector<8x128xf32> to vector<8x32xf32>
    %5 = vector.extract_strided_slice %3 {offsets = [0, 32], sizes = [8, 32], strides = [1, 1]} : vector<8x128xf32> to vector<8x32xf32>
    %6 = vector.extract_strided_slice %3 {offsets = [0, 65], sizes = [8, 1], strides = [1, 1]} : vector<8x128xf32> to vector<8x1xf32>
    %7 = vector.extract_strided_slice %3 {offsets = [0, 66], sizes = [8, 1], strides = [1, 1]} : vector<8x128xf32> to vector<8x1xf32>
    %c0_2 = arith.constant 0 : index
    %c0_3 = arith.constant 0 : index
    %8 = vector.load %arg3[%c0_2, %c0_3] : memref<32x128xf32, #tpu.memory_space<vmem>>, vector<32x128xf32>
    %c0_4 = arith.constant 0 : index
    %c0_5 = arith.constant 0 : index
    %9 = vector.load %arg4[%c0_4, %c0_5] : memref<1x32xf32, #tpu.memory_space<vmem>>, vector<1x32xf32>
    %c0_6 = arith.constant 0 : index
    %c0_7 = arith.constant 0 : index
    %10 = vector.load %arg5[%c0_6, %c0_7] : memref<1x1xf32, #tpu.memory_space<vmem>>, vector<1x1xf32>
    %c0_i32_8 = arith.constant 0 : i32
    %11 = arith.index_cast %c0_i32_8 : i32 to index
    %c0_9 = arith.constant 0 : index
    %c0_10 = arith.constant 0 : index
    %12 = vector.load %arg1[%11, %c0_9, %c0_10] : memref<1x8x128xf32, #tpu.memory_space<vmem>>, vector<1x8x128xf32>
    %13 = vector.shape_cast %12 : vector<1x8x128xf32> to vector<8x128xf32>
    %14 = arith.index_cast %c0_i32_8 : i32 to index
    %c0_11 = arith.constant 0 : index
    %c0_12 = arith.constant 0 : index
    %15 = vector.load %arg2[%14, %c0_11, %c0_12] : memref<1x8x1xf32, #tpu.memory_space<vmem>>, vector<1x8x1xf32>
    %16 = vector.shape_cast %15 : vector<1x8x1xf32> to vector<8x1xf32>
    %17 = math.roundeven %6 : vector<8x1xf32>
    %cst = arith.constant dense<0.000000e+00> : vector<8x128xf32>
    %18 = tpu.matmul %4, %8, %cst {dimension_numbers = #tpu.dot_dimension_numbers<[1], [0], [0], [1], [0, 0, 1, 1], [], []>} : vector<8x32xf32>, vector<32x128xf32>, vector<8x128xf32> -> vector<8x128xf32>
    %19 = arith.addf %13, %18 : vector<8x128xf32>
    %20 = vector.extract_strided_slice %19 {offsets = [0, 0], sizes = [8, 96], strides = [1, 1]} : vector<8x128xf32> to vector<8x96xf32>
    %21 = arith.negf %20 : vector<8x96xf32>
    %22 = math.exp %21 : vector<8x96xf32>
    %cst_13 = arith.constant 1.000000e+00 : f32
    %23 = vector.broadcast %cst_13 : f32 to vector<8x96xf32>
    %24 = arith.addf %23, %22 : vector<8x96xf32>
    %25 = arith.divf %23, %24 : vector<8x96xf32>
    %26 = vector.extract_strided_slice %19 {offsets = [0, 96], sizes = [8, 32], strides = [1, 1]} : vector<8x128xf32> to vector<8x32xf32>
    %27 = math.tanh %26 : vector<8x32xf32>
    %28 = vector.extract_strided_slice %25 {offsets = [0, 0], sizes = [8, 32], strides = [1, 1]} : vector<8x96xf32> to vector<8x32xf32>
    %29 = vector.extract_strided_slice %25 {offsets = [0, 32], sizes = [8, 32], strides = [1, 1]} : vector<8x96xf32> to vector<8x32xf32>
    %30 = vector.extract_strided_slice %25 {offsets = [0, 64], sizes = [8, 32], strides = [1, 1]} : vector<8x96xf32> to vector<8x32xf32>
    %31 = arith.mulf %29, %5 : vector<8x32xf32>
    %32 = arith.mulf %28, %27 : vector<8x32xf32>
    %33 = arith.addf %31, %32 : vector<8x32xf32>
    %34 = math.tanh %33 : vector<8x32xf32>
    %35 = arith.mulf %30, %34 : vector<8x32xf32>
    %36 = vector.broadcast %17 : vector<8x1xf32> to vector<8x32xf32>
    %37 = arith.mulf %35, %36 : vector<8x32xf32>
    %38 = vector.broadcast %17 : vector<8x1xf32> to vector<8x32xf32>
    %39 = arith.mulf %33, %38 : vector<8x32xf32>
    %40 = vector.broadcast %9 : vector<1x32xf32> to vector<8x32xf32>
    %41 = arith.mulf %39, %40 : vector<8x32xf32>
    %cst_14 = arith.constant dense<0.000000e+00> : vector<8xf32>
    %42 = vector.multi_reduction <add>, %41, %cst_14 [1] : vector<8x32xf32> to vector<8xf32>
    %43 = vector.shape_cast %42 : vector<8xf32> to vector<8x1xf32>
    %44 = vector.broadcast %10 : vector<1x1xf32> to vector<8x1xf32>
    %45 = arith.addf %43, %44 : vector<8x1xf32>
    %46 = arith.negf %45 : vector<8x1xf32>
    %47 = math.exp %46 : vector<8x1xf32>
    %cst_15 = arith.constant 1.000000e+00 : f32
    %48 = vector.broadcast %cst_15 : f32 to vector<8x1xf32>
    %49 = arith.addf %48, %47 : vector<8x1xf32>
    %50 = arith.divf %48, %49 : vector<8x1xf32>
    %51 = arith.mulf %50, %17 : vector<8x1xf32>
    %cst_16 = arith.constant 1.000000e+00 : f32
    %52 = vector.broadcast %cst_16 : f32 to vector<8x1xf32>
    %53 = arith.subf %52, %17 : vector<8x1xf32>
    %54 = vector.broadcast %53 : vector<8x1xf32> to vector<8x32xf32>
    %55 = arith.mulf %4, %54 : vector<8x32xf32>
    %56 = vector.broadcast %53 : vector<8x1xf32> to vector<8x32xf32>
    %57 = arith.mulf %5, %56 : vector<8x32xf32>
    %58 = arith.addf %6, %7 : vector<8x1xf32>
    %cst_17 = arith.constant 0.000000e+00 : f32
    %cst_18 = arith.constant 1.000000e+00 : f32
    %59 = vector.broadcast %cst_17 : f32 to vector<8x1xf32>
    %60 = arith.maximumf %59, %58 : vector<8x1xf32>
    %61 = vector.broadcast %cst_18 : f32 to vector<8x1xf32>
    %62 = arith.minimumf %61, %60 : vector<8x1xf32>
    %63 = arith.mulf %62, %53 : vector<8x1xf32>
    %cst_19 = arith.constant 5.000000e-01 : f32
    %64 = vector.broadcast %cst_19 : f32 to vector<8x1xf32>
    %65 = arith.cmpf ogt, %16, %64 : vector<8x1xf32>
    %66 = vector.shape_cast %65 : vector<8x1xi1> to vector<8x1xi1>
    %67 = vector.broadcast %66 : vector<8x1xi1> to vector<8x32xi1>
    %68 = arith.select %67, %55, %37 : vector<8x32xi1>, vector<8x32xf32>
    %69 = vector.shape_cast %65 : vector<8x1xi1> to vector<8x1xi1>
    %70 = vector.broadcast %69 : vector<8x1xi1> to vector<8x32xi1>
    %71 = arith.select %70, %57, %39 : vector<8x32xi1>, vector<8x32xf32>
    %72 = arith.select %65, %63, %51 : vector<8x1xi1>, vector<8x1xf32>
    %73 = arith.select %65, %7, %50 : vector<8x1xi1>, vector<8x1xf32>
    %cst_20 = arith.constant 5.000000e-01 : f32
    %74 = vector.broadcast %cst_20 : f32 to vector<8x1xf32>
    %75 = arith.divf %74, %72 : vector<8x1xf32>
    %76 = math.ceil %75 : vector<8x1xf32>
    %cst_21 = arith.constant 1.000000e+00 : f32
    %77 = vector.broadcast %cst_21 : f32 to vector<8x1xf32>
    %78 = arith.subf %76, %77 : vector<8x1xf32>
    %cst_22 = arith.constant 0.000000e+00 : f32
    %79 = vector.broadcast %cst_22 : f32 to vector<8x60xf32>
    %80 = tpu.concatenate %68, %71, %17, %72, %73, %78, %79 in 1 : vector<8x32xf32>, vector<8x32xf32>, vector<8x1xf32>, vector<8x1xf32>, vector<8x1xf32>, vector<8x1xf32>, vector<8x60xf32> -> vector<8x128xf32>
    %81 = arith.index_cast %c0_i32_8 : i32 to index
    %c0_23 = arith.constant 0 : index
    %c0_24 = arith.constant 0 : index
    %82 = vector.load %arg7[%81, %c0_23, %c0_24] : memref<1x8x128xf32, #tpu.memory_space<vmem>>, vector<1x8x128xf32>
    %83 = vector.shape_cast %82 : vector<1x8x128xf32> to vector<8x128xf32>
    %84 = vector.shape_cast %80 : vector<8x128xf32> to vector<1x8x128xf32>
    tpu.vector_store %arg7[%81, %c0_23, %c0_24], %84 {strides = array<i32>} : memref<1x8x128xf32, #tpu.memory_space<vmem>>, vector<1x8x128xf32>,
    %c1_i32 = arith.constant 1 : i32
    %cst_25 = arith.constant 0.000000e+00 : f32
    %85 = vector.broadcast %cst_25 : f32 to vector<8x1xf32>
    %cst_26 = arith.constant 0.000000e+00 : f32
    %86 = vector.broadcast %cst_26 : f32 to vector<8x60xf32>
    %87 = tpu.concatenate %68, %71, %85, %72, %73, %85, %86 in 1 : vector<8x32xf32>, vector<8x32xf32>, vector<8x1xf32>, vector<8x1xf32>, vector<8x1xf32>, vector<8x1xf32>, vector<8x60xf32> -> vector<8x128xf32>
    %c0_27 = arith.constant 0 : index
    %c0_28 = arith.constant 0 : index
    %88 = vector.load %arg8[%c0_27, %c0_28] : memref<8x128xf32, #tpu.memory_space<vmem>>, vector<8x128xf32>
    tpu.vector_store %arg8[%c0_27, %c0_28], %87 {strides = array<i32>} : memref<8x128xf32, #tpu.memory_space<vmem>>, vector<8x128xf32>,
    return
  }
  func.func @transform_0(%arg0: i32) -> (i32, i32, i32) {
    %c0_i32 = arith.constant 0 : i32
    %c0_i32_0 = arith.constant 0 : i32
    %c0_i32_1 = arith.constant 0 : i32
    return %arg0, %c0_i32, %c0_i32_0 : i32, i32, i32
  }
  func.func @transform_1(%arg0: i32) -> (i32, i32, i32) {
    %c0_i32 = arith.constant 0 : i32
    %c0_i32_0 = arith.constant 0 : i32
    %c0_i32_1 = arith.constant 0 : i32
    return %arg0, %c0_i32, %c0_i32_0 : i32, i32, i32
  }
  func.func @transform_2(%arg0: i32) -> (i32, i32) {
    %c0_i32 = arith.constant 0 : i32
    %c0_i32_0 = arith.constant 0 : i32
    %c0_i32_1 = arith.constant 0 : i32
    return %c0_i32, %c0_i32_0 : i32, i32
  }
  func.func @transform_3(%arg0: i32) -> (i32, i32) {
    %c0_i32 = arith.constant 0 : i32
    %c0_i32_0 = arith.constant 0 : i32
    %c0_i32_1 = arith.constant 0 : i32
    return %c0_i32, %c0_i32_0 : i32, i32
  }
  func.func @transform_4(%arg0: i32) -> (i32, i32) {
    %c0_i32 = arith.constant 0 : i32
    %c0_i32_0 = arith.constant 0 : i32
    %c0_i32_1 = arith.constant 0 : i32
    return %c0_i32, %c0_i32_0 : i32, i32
  }
  func.func @transform_5(%arg0: i32) -> (i32, i32) {
    %c0_i32 = arith.constant 0 : i32
    %c0_i32_0 = arith.constant 0 : i32
    %c0_i32_1 = arith.constant 0 : i32
    return %c0_i32, %c0_i32_0 : i32, i32
  }
  func.func @transform_6(%arg0: i32) -> (i32, i32, i32) {
    %c0_i32 = arith.constant 0 : i32
    %c0_i32_0 = arith.constant 0 : i32
    %c0_i32_1 = arith.constant 0 : i32
    return %arg0, %c0_i32, %c0_i32_0 : i32, i32, i32
  }
}

</mosaic_0001>

<llo_original>
// kernel: tpu_custom_call.1
$region0: #{tpu_custom_call.1}
  #allocation0 [shape = 'u32[]', space=smem, size = 0x4, offset = 0x4, fixed_abs, tag = 'smem constant byte address 0x4 - core index']
  #allocation1 [shape = 'u32[144,128]{1,0:T(1,128)}', space=vmem, size = 0x12000, scoped, tag = 'internal scratch']
  #allocation2 [shape = 'f32[8,128]{1,0:T(8,128)}', space=vmem, size = 0x1000, scoped, tag = 'scratch operand']
  #allocation3 [shape = 'f32[1,1]{1,0:T(1,128)S(1)}', space=vmem, size = 0x200, scoped, tag = 'scoped memory for tpu_custom_call.1']
  %s0 = inlined_call_operand.vmem [shape: f32[1,8,128], index: 0, kind: input, shape index: {}]
  %s1 = inlined_call_operand.vmem [shape: f32[1,8,1], index: 1, kind: input, shape index: {}]
  %s2 = inlined_call_operand.hbm [shape: f32[32,128], index: 2, kind: input, shape index: {}]
  %s3 = inlined_call_operand.vmem [shape: f32[1,32], index: 3, kind: input, shape index: {}]
  %s4 = inlined_call_operand.<no memory space> [shape: f32[1,1], index: 4, kind: input, shape index: {}]
  %s5 = inlined_call_operand.vmem [shape: f32[8,128], index: 5, kind: input, shape index: {}]
  %s6 = inlined_call_operand.hbm [shape: f32[1,8,128], index: 6, kind: output, shape index: {}]
  %s7 = sld [smem:[#allocation0]]
  $region42: #{tpu_custom_call.1} parent=0
    _
  %s9 = ssub.s32 1, %s7
  %s10 = scalar_select 0, %s9, %s7
  %v11 = vstv %s4
  %12 = vst [vmem:[#allocation3] sm:$0x1] %v11
  $region1: #{tpu_custom_call.1} parent=0
    #allocation4 [shape = 'u8[16384]{0}', space=vmem, size = 0x4000, scoped, tag = 'input window, operand 2, single buffered']
    #allocation5 [shape = 's32[1]{0}', space=sflag, size = 0x4, scoped, tag = 'scoped memory for tpu_custom_call.1']
    #allocation6 [shape = 's32[1]{0}', space=sflag, size = 0x4, scoped, tag = 'scoped memory for tpu_custom_call.1']
    #allocation7 [shape = 'u8[4096]{0}', space=vmem, size = 0x1000, scoped, tag = 'output window, operand 0, single buffered']
    %13 = vsyncpa [#allocation5], 0
    %14 = vsyncpa [#allocation6], 0
    // Predicated region
    $region2: #{tpu_custom_call.1} parent=1 // pred_check
      _
    $region3: #{tpu_custom_call.1} parent=1 // pred_check_branch
      %16 = sbr.rel (0) target = $region5
    $region4: #{tpu_custom_call.1} parent=1 // pred_region
      _
    $region5: #{tpu_custom_call.1} parent=1 // pred_fallthru
      _
    // Predicated region
    $region6: #{tpu_custom_call.1} parent=1 // pred_check
      _
    $region7: #{tpu_custom_call.1} parent=1 // pred_check_branch
      %18 = sbr.rel (0) target = $region9
    $region8: #{tpu_custom_call.1} parent=1 // pred_region
      _
    $region9: #{tpu_custom_call.1} parent=1 // pred_fallthru
      _
    // Predicated region
    $region10: #{tpu_custom_call.1} parent=1 // pred_check
      _
    $region11: #{tpu_custom_call.1} parent=1 // pred_check_branch
      %20 = sbr.rel (0) target = $region13
    $region12: #{tpu_custom_call.1} parent=1 // pred_region
      %s22 = ssub.s32 512, 512
      %23 = vsyncadd [#allocation5], %s22
      %s24 = sshll.u32 [#allocation4], 4
      %s25 = int_to_ptr.vmem [resolvable:$true] %s24
      %30 = dma.hbm_to_vmem [thread:$0]  %s2, 512, %s25, [#allocation5], 128, 128, 8
    $region13: #{tpu_custom_call.1} parent=1 // pred_fallthru
      _
    // Predicated region
    $region14: #{tpu_custom_call.1} parent=1 // pred_check
      _
    $region15: #{tpu_custom_call.1} parent=1 // pred_check_branch
      %32 = sbr.rel (0) target = $region17
    $region16: #{tpu_custom_call.1} parent=1 // pred_region
      _
    $region17: #{tpu_custom_call.1} parent=1 // pred_fallthru
      _
    // Predicated region
    $region18: #{tpu_custom_call.1} parent=1 // pred_check
      _
    $region19: #{tpu_custom_call.1} parent=1 // pred_check_branch
      %34 = sbr.rel (0) target = $region21
    $region20: #{tpu_custom_call.1} parent=1 // pred_region
      _
    $region21: #{tpu_custom_call.1} parent=1 // pred_fallthru
      _
    // Predicated region
    $region22: #{tpu_custom_call.1} parent=1 // pred_check
      _
    $region23: #{tpu_custom_call.1} parent=1 // pred_check_branch
      %36 = sbr.rel (0) target = $region25
    $region24: #{tpu_custom_call.1} parent=1 // pred_region
      _
    $region25: #{tpu_custom_call.1} parent=1 // pred_fallthru
      _
    // Predicated region
    $region26: #{tpu_custom_call.1} parent=1 // pred_check
      _
    $region27: #{tpu_custom_call.1} parent=1 // pred_check_branch
      %38 = sbr.rel (0) target = $region29
    $region28: #{tpu_custom_call.1} parent=1 // pred_region
      %39 = dma.done [#allocation5], 512
    $region29: #{tpu_custom_call.1} parent=1 // pred_fallthru
      _
    %p40 = scmp.eq.s32.totalorder 0, 0
    // Predicated region
    $region30: #{tpu_custom_call.1} parent=1 // pred_check
      %p41 = pneg %p40
    $region31: #{tpu_custom_call.1} parent=1 // pred_check_branch
      %43 = sbr.rel (%p41) target = $region33
    $region32: #{tpu_custom_call.1} parent=1 // pred_region
      %v44 = vld [vmem:[%s5] sm:$0xff]
      %45 = vst [vmem:[#allocation2] sm:$0xff] %v44
    $region33: #{tpu_custom_call.1} parent=1 // pred_fallthru
      _
    %v46 = vld [vmem:[#allocation2] sm:$0xff]
    %v47 = vld [vmem:[#allocation4] sm:$0xff]
    %v48 = vld [vmem:[#allocation4 + $0x8] sm:$0xff]
    %v49 = vld [vmem:[#allocation4 + $0x10] sm:$0xff]
    %v50 = vld [vmem:[#allocation4 + $0x18] sm:$0xff]
    %v51 = vld [vmem:[%s3] sm:$0x1]
    %v52 = vld [vmem:[#allocation3] sm:$0x1]
    %v53 = vld [vmem:[%s0] sm:$0xff]
    %v54 = vld [vmem:[%s1] sm:$0xff]
    %v55 = vround.ne.pseudo %v46
    %vm56 = vcmask 261120
    %v58 = vsel %vm56, %v46, 0
    %60 = vmatprep.subr.mxu0 0.0
    %61 = vmatpush1.msra.mxu0 %v47
    %62 = vmatprep.subr.mxu0 0.0
    %63 = vmatpush1.msra.mxu0 %v48
    %64 = vmatprep.subr.mxu0 0.0
    %65 = vmatpush1.msra.mxu0 %v49
    %66 = vmatprep.subr.mxu0 0.0
    %67 = vmatpush1.msra.mxu0 %v50
    %68 = vmatprep.subr.mxu0 0.0
    %69 = vmatpush1.msra.mxu0 0.0
    %70 = vmatprep.subr.mxu0 0.0
    %71 = vmatpush1.msra.mxu0 0.0
    %72 = vmatprep.subr.mxu0 0.0
    %73 = vmatpush1.msra.mxu0 0.0
    %74 = vmatprep.subr.mxu0 0.0
    %75 = vmatpush1.msra.mxu0 0.0
    %76 = vmatprep.subr.mxu0 0.0
    %77 = vmatpush1.msra.mxu0 0.0
    %78 = vmatprep.subr.mxu0 0.0
    %79 = vmatpush1.msra.mxu0 0.0
    %80 = vmatprep.subr.mxu0 0.0
    %81 = vmatpush1.msra.mxu0 0.0
    %82 = vmatprep.subr.mxu0 0.0
    %83 = vmatpush1.msra.mxu0 0.0
    %84 = vmatprep.subr.mxu0 0.0
    %85 = vmatpush1.msra.mxu0 0.0
    %86 = vmatprep.subr.mxu0 0.0
    %87 = vmatpush1.msra.mxu0 0.0
    %88 = vmatprep.subr.mxu0 0.0
    %89 = vmatpush1.msra.mxu0 0.0
    %90 = vmatprep.subr.mxu0 0.0
    %91 = vmatpush1.msra.mxu0 0.0
    %92 = vmatprep.subr.mxu0 0.0
    %93 = vmatpush1.msra.mxu0 0.0
    %94 = vmatprep.subr.mxu0 0.0
    %95 = vmatpush1.msra.mxu0 0.0
    %96 = vmatprep.subr.mxu0 0.0
    %97 = vmatpush1.msra.mxu0 0.0
    %98 = vmatprep.subr.mxu0 0.0
    %99 = vmatpush1.msra.mxu0 0.0
    %100 = vmatprep.subr.mxu0 0.0
    %101 = vmatpush1.msra.mxu0 0.0
    %102 = vmatprep.subr.mxu0 0.0
    %103 = vmatpush1.msra.mxu0 0.0
    %104 = vmatprep.subr.mxu0 0.0
    %105 = vmatpush1.msra.mxu0 0.0
    %106 = vmatprep.subr.mxu0 0.0
    %107 = vmatpush1.msra.mxu0 0.0
    %108 = vmatprep.subr.mxu0 0.0
    %109 = vmatpush1.msra.mxu0 0.0
    %110 = vmatprep.subr.mxu0 0.0
    %111 = vmatpush1.msra.mxu0 0.0
    %112 = vmatprep.subr.mxu0 0.0
    %113 = vmatpush1.msra.mxu0 0.0
    %114 = vmatprep.subr.mxu0 0.0
    %115 = vmatpush1.msra.mxu0 0.0
    %116 = vmatprep.subr.mxu0 0.0
    %117 = vmatpush1.msra.mxu0 0.0
    %118 = vmatprep.subr.mxu0 0.0
    %119 = vmatpush1.msra.mxu0 0.0
    %120 = vmatprep.subr.mxu0 0.0
    %121 = vmatpush1.msra.mxu0 0.0
    %122 = vmatprep.subr.mxu0 0.0
    %123 = vmatpush1.msra.mxu0 0.0
    %124 = vmatprep.mubr.f32.mxu0 0.0
    %125 = vmatmul.mubr.f32.gmra.mrb[0].mxu0 %v58
    %v126 = vpop.f32.mrb[0].mxu0
    %v127 = vadd.f32 0.0, %v126
    %v128 = vpop.f32.mrb[0].mxu0
    %129 = vdwg.mxu0
    %v130 = vadd.f32 %v53, %v127
    %v131 = vxor.u32 %v130, 2147483648
    %v132 = vmul.f32 %v131, 1.442695
    %v133 = vpow.pop %v132
    %v134 = vadd.f32 %v133, 1.0
    %v135 = vrcp.pop %v134
    %v136 = vmul.f32 1.0, %v135
    %v137 = vtanh.pop %v130
    %v138 = vmul.f32 %v136, %v46
    %140 = vrot.lane.b32.xlu0 %v137, 32
    %v141 = vpop.permute.xlu0 %140
    %v143 = vmul.f32 %v136, %v141
    %145 = vrot.lane.b32.xlu0 %v143, 32
    %v146 = vpop.permute.xlu0 %145
    %v148 = vadd.f32 %v138, %v146
    %v149 = vtanh.pop %v148
    %151 = vrot.lane.b32.xlu0 %v149, 32
    %v152 = vpop.permute.xlu0 %151
    %v154 = vmul.f32 %v136, %v152
    %156 = vset.pattern.permute.xlu0 65
    %157 = vperm.xlu0 %156, %v55
    %v158 = vpop.permute.xlu0 %157
    %v160 = vmul.f32 %v154, %v158
    %v161 = vmul.f32 %v148, %v158
    %v163 = vlaneseq
    %v164 = vshrl.u32 %v163, 7
    %v165 = vsub.s32 0, %v164
    %v166 = vrot.slane %v51, %v165
    %167 = vrot.lane.b32.xlu0 %v166, 32
    %v168 = vpop.permute.xlu0 %167
    %v170 = vmul.f32 %v161, %v168
    %172 = vrot.lane.b32.xlu0 %v170, 96
    %v173 = vpop.permute.xlu0 %172
    %v175 = vsel %vm56, %v173, 0.0
    %176 = vadd.xlane.f32.xlu0 %v175
    %v177 = vpop.xlane.xlu0 %176
    %v179 = vlaneseq
    %v180 = vshrl.u32 %v179, 7
    %v181 = vsub.s32 0, %v180
    %v182 = vrot.slane %v52, %v181
    %v184 = vadd.f32 %v177, %v182
    %v185 = vxor.u32 %v184, 2147483648
    %v186 = vmul.f32 %v185, 1.442695
    %v187 = vpow.pop %v186
    %v188 = vadd.f32 %v187, 1.0
    %v189 = vrcp.pop %v188
    %v190 = vmul.f32 1.0, %v189
    %191 = vrot.lane.b32.xlu0 %v55, 63
    %v192 = vpop.permute.xlu0 %191
    %v194 = vmul.f32 %v190, %v192
    %v195 = vsub.f32 1.0, %v55
    %197 = vset.pattern.permute.xlu0 65
    %198 = vperm.xlu0 %197, %v195
    %v199 = vpop.permute.xlu0 %198
    %v201 = vmul.f32 %v46, %v199
    %202 = vrot.lane.b32.xlu0 %v46, 127
    %v203 = vpop.permute.xlu0 %202
    %v205 = vadd.f32 %v46, %v203
    %v206 = vmax.f32 %v205, 0.0
    %v207 = vmin.f32 %v206, 1.0
    %v208 = vmul.f32 %v207, %v195
    %vm209 = vcmp.gt.f32.partialorder %v54, 0.5
    %v210 = vsel %vm209, 1, 0
    %211 = vset.pattern.permute.xlu0 0
    %212 = vperm.xlu0 %211, %v210
    %v213 = vpop.permute.xlu0 %212
    %vm214 = vcmp.eq.s32.totalorder %v213, 1
    %216 = vrot.lane.b32.xlu0 %v160, 64
    %v217 = vpop.permute.xlu0 %216
    %v219 = vsel %vm214, %v201, %v217
    %v220 = vsel %vm214, %v201, %v161
    %222 = vrot.lane.b32.xlu0 %v208, 63
    %v223 = vpop.permute.xlu0 %222
    %v225 = vsel %vm209, %v223, %v194
    %226 = vrot.lane.b32.xlu0 %v46, 62
    %v227 = vpop.permute.xlu0 %226
    %v229 = vsel %vm209, %v227, %v190
    %v230 = vrcp.pop %v225
    %v231 = vmul.f32 0.5, %v230
    %v232 = vceil.f32 %v231
    %v233 = vsub.f32 %v232, 1.0
    %234 = vrot.lane.b32.xlu0 %v55, 127
    %v235 = vpop.permute.xlu0 %234
    %238 = vrot.lane.b32.xlu0 %v225, 65
    %v239 = vpop.permute.xlu0 %238
    %242 = vrot.lane.b32.xlu0 %v229, 66
    %v243 = vpop.permute.xlu0 %242
    %246 = vrot.lane.b32.xlu0 %v233, 67
    %v247 = vpop.permute.xlu0 %246
    %v249 = vsel %vm56, %v219, %v220
    %vm250 = vcmask 523264
    %v251 = vsel %vm250, %v249, %v235
    %vm252 = vcmask 531456
    %v253 = vsel %vm252, %v251, %v239
    %vm254 = vcmask 539648
    %v255 = vsel %vm254, %v253, %v243
    %vm256 = vcmask 547840
    %v257 = vsel %vm256, %v255, %v247
    %vm258 = vcmask 556032
    %v259 = vsel %vm258, %v257, 0.0
    %260 = vst [vmem:[#allocation7] sm:$0xff] %v259
    %v261 = vsel %vm250, %v249, 0.0
    %v262 = vsel %vm252, %v261, %v239
    %v263 = vsel %vm254, %v262, %v243
    %v264 = vsel %vm256, %v263, 0.0
    %v265 = vsel %vm258, %v264, 0.0
    %266 = vst [vmem:[#allocation2] sm:$0xff] %v265
    // Predicated region
    $region34: #{tpu_custom_call.1} parent=1 // pred_check
      _
    $region35: #{tpu_custom_call.1} parent=1 // pred_check_branch
      %268 = sbr.rel (0) target = $region37
    $region36: #{tpu_custom_call.1} parent=1 // pred_region
      %s270 = ssub.s32 128, 128
      %271 = vsyncadd [#allocation6], %s270
      %s273 = sshll.u32 [#allocation7], 4
      %s274 = int_to_ptr.vmem [resolvable:$true] %s273
      %276 = dma.vmem_to_hbm [thread:$0]  %s274, 128, %s6, [#allocation6]
    $region37: #{tpu_custom_call.1} parent=1 // pred_fallthru
      _
    // Predicated region
    $region38: #{tpu_custom_call.1} parent=1 // pred_check
      _
    $region39: #{tpu_custom_call.1} parent=1 // pred_check_branch
      %278 = sbr.rel (0) target = $region41
    $region40: #{tpu_custom_call.1} parent=1 // pred_region
      %279 = dma.done [#allocation6], 128
    $region41: #{tpu_custom_call.1} parent=1 // pred_fallthru
      _
    %280 = vsyncpa [#allocation5], 1
    %281 = vsyncpa [#allocation6], 1

</llo_original>
